<compile_context>
chip_gen: v7x
topology: tpu7x:2x2x1
jax: 0.10.0
libtpu: 0.0.40
codegen_flags: <defaults>
</compile_context>

<pallas_src>
from functools import partial

import numpy as np
import jax
import jax.numpy as jnp
from jax import lax
from jax.experimental import pallas as pl
from jax.experimental.pallas import tpu as pltpu


def _round_up(v: int, m: int) -> int:
    return (v + m - 1) // m * m


def _trend_ma_kernel(x_ref, o_ref, *, kernel_size: int, use_scan: bool):
    """Replicate-front-padded, stride-1 moving average along the lane axis.

    x_ref / o_ref: (tm, W) blocks of the [B*C, L] view, W % 128 == 0.  Lanes
    >= L (and rows >= M) hold unspecified padding that never flows into valid
    output lanes.  Output column t holds mean(x[max(t-k+1, 0)], ..., x[t]).
    """
    k = kernel_size
    x = x_ref[...].astype(jnp.float32)
    tm, w = x.shape

    if k <= 1:
        o_ref[...] = x.astype(o_ref.dtype)
        return

    lane = lax.broadcasted_iota(jnp.int32, (tm, w), 1)    # hoisted once
    first = jnp.broadcast_to(x[:, 0:1], (tm, w))          # hoisted once
    inv_k = 1.0 / k

    if not use_scan:
        # Small kernels: (k-1) aligned roll + select + add steps (XLU + VPU).
        acc = x
        for j in range(1, k):
            if j < w:
                rolled = pltpu.roll(x, shift=j, axis=1)    # lane t>=j gets x[t-j]
                acc = acc + jnp.where(lane < j, first, rolled)
            else:
                acc = acc + first                          # window entirely in front pad
        o_ref[...] = (acc * inv_k).astype(o_ref.dtype)
        return

    # Large kernels: inclusive prefix sum via Hillis-Steele (~log2(W) steps).
    s = x
    d = 1
    while d < w:
        rolled = pltpu.roll(s, shift=d, axis=1)
        s = s + jnp.where(lane < d, 0.0, rolled)
        d *= 2
    # window_sum[t] = S[t] - S[t-k] (0 for t < k) + max(k-1-t, 0) * x[:, 0]
    if k < w:
        s_k = jnp.where(lane < k, 0.0, pltpu.roll(s, shift=k, axis=1))
    else:
        s_k = jnp.zeros_like(s)
    cnt = jnp.maximum((k - 1) - lane, 0).astype(jnp.float32)
    o_ref[...] = ((s - s_k + cnt * first) * inv_k).astype(o_ref.dtype)


def _choose_tm(m: int, w: int) -> int:
    """Row-tile size: ~2 MiB f32 block budget, >= 2 grid tiles when possible."""
    budget_bytes = 2 * 1024 * 1024
    tm = max(8, (budget_bytes // (w * 4)) // 8 * 8)
    tm = min(tm, 1024)
    # Keep at least 2 row tiles so v7x can shard the "parallel" axis across its
    # two TensorCores (harmless on v5e/v6e, which have a single TC).
    two_tiles = _round_up(max((m + 1) // 2, 1), 8)
    tm = min(tm, two_tiles)
    tm = max(8, min(tm, _round_up(m, 8)))
    return tm


@partial(jax.jit, static_argnames=("kernel_size", "stride"))
def trend_forward(x: jnp.ndarray, kernel_size: int, stride: int) -> jnp.ndarray:
    """x: [B, C, L] -> [B, C, L_out], L_out = (L - 1) // stride + 1."""
    b, c, l = x.shape
    k = int(kernel_size)
    s = int(stride)
    m = b * c
    x2d = x.reshape(m, l)

    w = _round_up(l, 128)          # lane-dense block width; the array stays unpadded
    tm = _choose_tm(m, w)
    grid_m = pl.cdiv(m, tm)

    # Prefix-sum path replaces (k-1) rolls with ~log2(W)+1 rolls for big kernels.
    n_scan_rolls = (w - 1).bit_length() + 1
    use_scan = (k >= 16) and ((k - 1) > n_scan_rolls)

    kernel = partial(_trend_ma_kernel, kernel_size=k, use_scan=use_scan)
    ma = pl.pallas_call(
        kernel,
        out_shape=jax.ShapeDtypeStruct((m, l), x.dtype),
        grid=(grid_m,),
        in_specs=[pl.BlockSpec((tm, w), lambda i: (i, 0))],
        out_specs=pl.BlockSpec((tm, w), lambda i: (i, 0)),
        compiler_params=pltpu.CompilerParams(
            dimension_semantics=("parallel",),
            vmem_limit_bytes=32 * 1024 * 1024,
        ),
    )(x2d)

    if s > 1:
        # TODO(synk): fold this subsample into the kernel (strided lane read).
        ma = ma[:, ::s]
    l_out = (l - 1) // s + 1
    return ma.reshape(b, c, l_out)


def trend_reference(x: jnp.ndarray, kernel_size: int, stride: int) -> jnp.ndarray:
    """Pure-JAX reference mirroring the PyTorch module exactly."""
    front = jnp.repeat(x[:, :, 0:1], kernel_size - 1, axis=-1)
    xp = jnp.concatenate([front, x], axis=-1)
    l_out = (x.shape[-1] - 1) // stride + 1
    windows = jnp.stack(
        [xp[:, :, t * stride: t * stride + kernel_size] for t in range(l_out)],
        axis=2,
    )
    return windows.mean(axis=-1)


if __name__ == "__main__":
    root = jax.random.PRNGKey(0)
    cases = [
        # (shape, kernel_size, stride, atol)
        ((2, 4, 16), 5, 1, 1e-5),     # typical Trend usage, L < 128
        ((2, 3, 200), 25, 1, 1e-4),   # prefix-sum path, non-128 L, partial row tile
        ((2, 4, 16), 4, 2, 1e-5),     # stride > 1 path
        ((4, 40, 128), 7, 1, 1e-5),   # multi-tile "parallel" row grid (2 tiles)
    ]
    keys = jax.random.split(root, len(cases))
    for i, (shape, k, s, atol) in enumerate(cases):
        x = jax.random.normal(keys[i], shape, dtype=jnp.float32)
        out = jax.block_until_ready(trend_forward(x, kernel_size=k, stride=s))
        ref = trend_reference(x, kernel_size=k, stride=s)
        assert out.shape == ref.shape, (shape, k, s, out.shape, ref.shape)
        np.testing.assert_allclose(np.asarray(out), np.asarray(ref),
                                   atol=atol, rtol=1e-5)
    print("KERNEL_OK")
</pallas_src>

<mosaic_0001>
module attributes {stable_mosaic.version = 11 : i64} {
  func.func @_trend_ma_kernel(%arg0: i32, %arg1: memref<8x128xf32, #tpu.memory_space<vmem>>, %arg2: memref<8x128xf32, #tpu.memory_space<vmem>>) attributes {dimension_semantics = [#tpu.dimension_semantics<parallel>], iteration_bounds = array<i64: 1>, scalar_prefetch = 0 : i64, scratch_operands = 0 : i64, tpu.core_type = #tpu.core_type<tc>, window_params = [{transform_indices = @transform_0, window_bounds = array<i64: 8, 128>}, {transform_indices = @transform_1, window_bounds = array<i64: 8, 128>}]} {
    %c0 = arith.constant 0 : index
    %c0_0 = arith.constant 0 : index
    %0 = vector.load %arg1[%c0, %c0_0] : memref<8x128xf32, #tpu.memory_space<vmem>>, vector<8x128xf32>
    %1 = tpu.iota {dimensions = array<i32: 1>} : vector<8x128xi32>
    %2 = vector.extract_strided_slice %0 {offsets = [0, 0], sizes = [8, 1], strides = [1, 1]} : vector<8x128xf32> to vector<8x1xf32>
    %3 = vector.shape_cast %2 : vector<8x1xf32> to vector<8x1xf32>
    %4 = vector.broadcast %3 : vector<8x1xf32> to vector<8x128xf32>
    %c1_i32 = arith.constant 1 : i32
    %5 = tpu.dynamic_rotate %0 by %c1_i32 dim 1 : vector<8x128xf32>, i32 -> vector<8x128xf32>
    %c1_i32_1 = arith.constant 1 : i32
    %6 = vector.broadcast %c1_i32_1 : i32 to vector<8x128xi32>
    %7 = arith.cmpi slt, %1, %6 : vector<8x128xi32>
    %8 = arith.select %7, %4, %5 : vector<8x128xi1>, vector<8x128xf32>
    %9 = arith.addf %0, %8 : vector<8x128xf32>
    %c2_i32 = arith.constant 2 : i32
    %10 = tpu.dynamic_rotate %0 by %c2_i32 dim 1 : vector<8x128xf32>, i32 -> vector<8x128xf32>
    %c2_i32_2 = arith.constant 2 : i32
    %11 = vector.broadcast %c2_i32_2 : i32 to vector<8x128xi32>
    %12 = arith.cmpi slt, %1, %11 : vector<8x128xi32>
    %13 = arith.select %12, %4, %10 : vector<8x128xi1>, vector<8x128xf32>
    %14 = arith.addf %9, %13 : vector<8x128xf32>
    %c3_i32 = arith.constant 3 : i32
    %15 = tpu.dynamic_rotate %0 by %c3_i32 dim 1 : vector<8x128xf32>, i32 -> vector<8x128xf32>
    %c3_i32_3 = arith.constant 3 : i32
    %16 = vector.broadcast %c3_i32_3 : i32 to vector<8x128xi32>
    %17 = arith.cmpi slt, %1, %16 : vector<8x128xi32>
    %18 = arith.select %17, %4, %15 : vector<8x128xi1>, vector<8x128xf32>
    %19 = arith.addf %14, %18 : vector<8x128xf32>
    %c4_i32 = arith.constant 4 : i32
    %20 = tpu.dynamic_rotate %0 by %c4_i32 dim 1 : vector<8x128xf32>, i32 -> vector<8x128xf32>
    %c4_i32_4 = arith.constant 4 : i32
    %21 = vector.broadcast %c4_i32_4 : i32 to vector<8x128xi32>
    %22 = arith.cmpi slt, %1, %21 : vector<8x128xi32>
    %23 = arith.select %22, %4, %20 : vector<8x128xi1>, vector<8x128xf32>
    %24 = arith.addf %19, %23 : vector<8x128xf32>
    %cst = arith.constant 2.000000e-01 : f32
    %25 = vector.broadcast %cst : f32 to vector<8x128xf32>
    %26 = arith.mulf %24, %25 : vector<8x128xf32>
    %c0_5 = arith.constant 0 : index
    %c0_6 = arith.constant 0 : index
    %27 = vector.load %arg2[%c0_5, %c0_6] : memref<8x128xf32, #tpu.memory_space<vmem>>, vector<8x128xf32>
    tpu.vector_store %arg2[%c0_5, %c0_6], %26 {strides = array<i32>} : memref<8x128xf32, #tpu.memory_space<vmem>>, vector<8x128xf32>,
    return
  }
  func.func @transform_0(%arg0: i32) -> (i32, i32) {
    %c0_i32 = arith.constant 0 : i32
    %c0_i32_0 = arith.constant 0 : i32
    return %arg0, %c0_i32 : i32, i32
  }
  func.func @transform_1(%arg0: i32) -> (i32, i32) {
    %c0_i32 = arith.constant 0 : i32
    %c0_i32_0 = arith.constant 0 : i32
    return %arg0, %c0_i32 : i32, i32
  }
}

</mosaic_0001>

<llo_original>
// kernel: trend_forward.1
$region0: #{trend_forward.1}
  #allocation0 [shape = 'u32[]', space=smem, size = 0x4, offset = 0x4, fixed_abs, tag = 'smem constant byte address 0x4 - core index']
  #allocation1 [shape = 'u32[144,128]{1,0:T(1,128)}', space=vmem, size = 0x12000, scoped, tag = 'internal scratch']
  %s0 = inlined_call_operand.hbm [shape: f32[8,16], index: 0, kind: input, shape index: {}]
  %s1 = inlined_call_operand.hbm [shape: f32[8,16], index: 1, kind: output, shape index: {}]
  %s2 = sld [smem:[#allocation0]]
  $region18: #{trend_forward.1} parent=0
    _
  %s4 = ssub.s32 1, %s2
  %s5 = scalar_select 0, %s4, %s2
  $region1: #{trend_forward.1} parent=0
    #allocation2 [shape = 'u8[4096]{0}', space=vmem, size = 0x1000, scoped, tag = 'input window, operand 0, single buffered']
    #allocation3 [shape = 's32[1]{0}', space=sflag, size = 0x4, scoped, tag = 'scoped memory for trend_forward.1']
    #allocation4 [shape = 's32[1]{0}', space=sflag, size = 0x4, scoped, tag = 'scoped memory for trend_forward.1']
    #allocation5 [shape = 'u8[4096]{0}', space=vmem, size = 0x1000, scoped, tag = 'output window, operand 0, single buffered']
    %6 = vsyncpa [#allocation3], 0
    %7 = vsyncpa [#allocation4], 0
    // Predicated region
    $region2: #{trend_forward.1} parent=1 // pred_check
      _
    $region3: #{trend_forward.1} parent=1 // pred_check_branch
      %9 = sbr.rel (0) target = $region5
    $region4: #{trend_forward.1} parent=1 // pred_region
      %s11 = ssub.s32 128, 128
      %12 = vsyncadd [#allocation3], %s11
      %s14 = sshll.u32 [#allocation2], 4
      %s15 = int_to_ptr.vmem [resolvable:$true] %s14
      %17 = dma.hbm_to_vmem [thread:$0]  %s0, 128, %s15, [#allocation3]
    $region5: #{trend_forward.1} parent=1 // pred_fallthru
      _
    // Predicated region
    $region6: #{trend_forward.1} parent=1 // pred_check
      _
    $region7: #{trend_forward.1} parent=1 // pred_check_branch
      %19 = sbr.rel (0) target = $region9
    $region8: #{trend_forward.1} parent=1 // pred_region
      %20 = dma.done [#allocation3], 128
    $region9: #{trend_forward.1} parent=1 // pred_fallthru
      _
    %v21 = vld [vmem:[#allocation2] sm:$0xff]
    %v22 = vlaneseq
    %v23 = vand.u32 %v22, 127
    %25 = vset.pattern.permute.xlu0 0
    %26 = vperm.xlu0 %25, %v21
    %v27 = vpop.permute.xlu0 %26
    %29 = vrot.lane.b32.xlu0 %v21, 1
    %v30 = vpop.permute.xlu0 %29
    %vm31 = vcmp.lt.s32.totalorder %v23, 1
    %v32 = vsel %vm31, %v27, %v30
    %v33 = vadd.f32 %v21, %v32
    %34 = vrot.lane.b32.xlu0 %v21, 2
    %v35 = vpop.permute.xlu0 %34
    %vm36 = vcmp.lt.s32.totalorder %v23, 2
    %v37 = vsel %vm36, %v27, %v35
    %v38 = vadd.f32 %v33, %v37
    %39 = vrot.lane.b32.xlu0 %v21, 3
    %v40 = vpop.permute.xlu0 %39
    %vm41 = vcmp.lt.s32.totalorder %v23, 3
    %v42 = vsel %vm41, %v27, %v40
    %v43 = vadd.f32 %v38, %v42
    %44 = vrot.lane.b32.xlu0 %v21, 4
    %v45 = vpop.permute.xlu0 %44
    %vm46 = vcmp.lt.s32.totalorder %v23, 4
    %v47 = vsel %vm46, %v27, %v45
    %v48 = vadd.f32 %v43, %v47
    %v49 = vmul.f32 %v48, 0.2
    %50 = vst [vmem:[#allocation5] sm:$0xff] %v49
    // Predicated region
    $region10: #{trend_forward.1} parent=1 // pred_check
      _
    $region11: #{trend_forward.1} parent=1 // pred_check_branch
      %52 = sbr.rel (0) target = $region13
    $region12: #{trend_forward.1} parent=1 // pred_region
      %s54 = ssub.s32 128, 128
      %55 = vsyncadd [#allocation4], %s54
      %s57 = sshll.u32 [#allocation5], 4
      %s58 = int_to_ptr.vmem [resolvable:$true] %s57
      %60 = dma.vmem_to_hbm [thread:$0]  %s58, 128, %s1, [#allocation4]
    $region13: #{trend_forward.1} parent=1 // pred_fallthru
      _
    // Predicated region
    $region14: #{trend_forward.1} parent=1 // pred_check
      _
    $region15: #{trend_forward.1} parent=1 // pred_check_branch
      %62 = sbr.rel (0) target = $region17
    $region16: #{trend_forward.1} parent=1 // pred_region
      %63 = dma.done [#allocation4], 128
    $region17: #{trend_forward.1} parent=1 // pred_fallthru
      _
    %64 = vsyncpa [#allocation3], 1
    %65 = vsyncpa [#allocation4], 1

</llo_original>
